<compile_context>
chip_gen: v5e
topology: v5e:2x2
jax: 0.10.0
libtpu: 0.0.40
codegen_flags: <defaults>
</compile_context>

<pallas_src>
import jax
import jax.numpy as jnp
from jax.experimental import pallas as pl
from jax.experimental.pallas import tpu as pltpu

LANE = 128     # vreg lane width
SUBLANE = 8    # vreg sublane count


def _round_up(n, m):
    return ((n + m - 1) // m) * m


def _fused_linear_kernel(x_ref, w_ref, b_ref, o_ref):
    # Single MXU matmul covers both branches; f32 accumulation, f32 bias add.
    acc = jnp.dot(x_ref[...], w_ref[...], preferred_element_type=jnp.float32)
    o_ref[...] = (acc + b_ref[...]).astype(o_ref.dtype)


def parallel_adapter(x2d, w1, b1, w2, b2, *, block_rows=512,
                     matmul_dtype=jnp.bfloat16):
    """ParallelAdapter forward: original Linear + parallel Linear, fused.

    x2d     : (rows, hidden_in)        activations (batch*seq flattened)
    w1, w2  : (hidden_out, hidden_in)  PyTorch nn.Linear weight layout
    b1, b2  : (hidden_out,)            PyTorch nn.Linear bias layout
    """
    rows, hidden_in = x2d.shape
    hidden_out = w1.shape[0]
    out_dtype = x2d.dtype

    # ---- Algebraic branch fusion (done once, outside the kernel). ----
    w_fused = (w1.astype(jnp.float32) + w2.astype(jnp.float32)).T    # (in, out)
    b_fused = (b1.astype(jnp.float32) + b2.astype(jnp.float32)).reshape(1, -1)

    # ---- Padding: lane-dense last dims (x128) and tileable rows. ----
    hin_p = _round_up(hidden_in, LANE)
    hout_p = _round_up(hidden_out, LANE)
    tm = _round_up(min(block_rows, max(rows, SUBLANE)), SUBLANE)
    # NOTE: on v7x (64 MiB VMEM, 2 TCs) prefer block_rows ~ half the v6e value.
    rows_p = _round_up(rows, tm)

    x_p = jnp.pad(x2d, ((0, rows_p - rows), (0, hin_p - hidden_in)))
    w_p = jnp.pad(w_fused, ((0, hin_p - hidden_in), (0, hout_p - hidden_out)))
    b_p = jnp.pad(b_fused, ((0, 0), (0, hout_p - hidden_out)))

    # bf16 operands -> half the x/W DMA bytes and full-rate MXU; accum stays f32.
    x_p = x_p.astype(matmul_dtype)
    w_p = w_p.astype(matmul_dtype)

    grid = (rows_p // tm,)
    msize = jnp.dtype(matmul_dtype).itemsize
    vmem_bytes = (2 * tm * hin_p * msize          # double-buffered x tiles
                  + 2 * tm * hout_p * 4           # double-buffered out tiles
                  + 2 * hin_p * hout_p * msize    # resident fused weight
                  + 2 * SUBLANE * hout_p * 4      # resident bias
                  + (4 << 20))                    # headroom
    vmem_bytes = int(min(max(vmem_bytes, 32 << 20), 100 << 20))

    # TODO(synk): for very large hidden (weight no longer VMEM-resident) add a
    # second grid axis over hidden_out and tile the weight as well.
    out_p = pl.pallas_call(
        _fused_linear_kernel,
        out_shape=jax.ShapeDtypeStruct((rows_p, hout_p), out_dtype),
        grid=grid,
        in_specs=[
            pl.BlockSpec((tm, hin_p), lambda i: (i, 0)),       # x: tiled over rows
            pl.BlockSpec((hin_p, hout_p), lambda i: (0, 0)),   # fused W: resident
            pl.BlockSpec((1, hout_p), lambda i: (0, 0)),       # fused bias: resident
        ],
        out_specs=pl.BlockSpec((tm, hout_p), lambda i: (i, 0)),
        compiler_params=pltpu.CompilerParams(
            dimension_semantics=("parallel",),   # shard row tiles across TCs (v7x)
            vmem_limit_bytes=vmem_bytes,
        ),
    )(x_p, w_p, b_p)

    return out_p[:rows, :hidden_out]


if __name__ == "__main__":
    batch, seq, hidden = 2, 8, 32

    key = jax.random.PRNGKey(0)
    kx, kw1, kb1, kw2, kb2 = jax.random.split(key, 5)

    x = jax.random.normal(kx, (batch, seq, hidden), dtype=jnp.float32)
    # PyTorch nn.Linear layout: weight (out, in), bias (out,)
    w1 = jax.random.normal(kw1, (hidden, hidden), dtype=jnp.float32) * 0.05
    b1 = jax.random.normal(kb1, (hidden,), dtype=jnp.float32) * 0.05
    w2 = jax.random.normal(kw2, (hidden, hidden), dtype=jnp.float32) * 0.05
    b2 = jax.random.normal(kb2, (hidden,), dtype=jnp.float32) * 0.05

    # Glue: flatten batch/seq for the kernel, reshape back afterwards.
    x2d = x.reshape(batch * seq, hidden)
    out2d = parallel_adapter(x2d, w1, b1, w2, b2)
    out = out2d.reshape(batch, seq, hidden)
    jax.block_until_ready(out)

    # Pure-JAX reference of ParallelAdapter.forward (two separate branches).
    ref = (x @ w1.T + b1) + (x @ w2.T + b2)
    # bf16 operands change rounding order -> tolerance looser than pure-f32.
    assert jnp.allclose(out, ref, atol=2e-2, rtol=2e-2), "mismatch vs reference"

    print("KERNEL_OK")
</pallas_src>

<mosaic_0001>
module attributes {stable_mosaic.version = 11 : i64} {
  func.func @_fused_linear_kernel(%arg0: i32, %arg1: memref<16x128xbf16, #tpu.memory_space<vmem>>, %arg2: memref<128x128xbf16, #tpu.memory_space<vmem>>, %arg3: memref<1x128xf32, #tpu.memory_space<vmem>>, %arg4: memref<16x128xf32, #tpu.memory_space<vmem>>) attributes {dimension_semantics = [#tpu.dimension_semantics<parallel>], iteration_bounds = array<i64: 1>, scalar_prefetch = 0 : i64, scratch_operands = 0 : i64, tpu.core_type = #tpu.core_type<tc>, window_params = [{transform_indices = @transform_0, window_bounds = array<i64: 16, 128>}, {pipeline_mode = #tpu.pipeline_mode<synchronous>, transform_indices = @transform_1, window_bounds = array<i64: 128, 128>}, {pipeline_mode = #tpu.pipeline_mode<synchronous>, transform_indices = @transform_2, window_bounds = array<i64: 1, 128>}, {transform_indices = @transform_3, window_bounds = array<i64: 16, 128>}]} {
    %c0 = arith.constant 0 : index
    %c0_0 = arith.constant 0 : index
    %0 = vector.load %arg1[%c0, %c0_0] : memref<16x128xbf16, #tpu.memory_space<vmem>>, vector<16x128xbf16>
    %c0_1 = arith.constant 0 : index
    %c0_2 = arith.constant 0 : index
    %1 = vector.load %arg2[%c0_1, %c0_2] : memref<128x128xbf16, #tpu.memory_space<vmem>>, vector<128x128xbf16>
    %cst = arith.constant dense<0.000000e+00> : vector<16x128xf32>
    %2 = tpu.matmul %0, %1, %cst {dimension_numbers = #tpu.dot_dimension_numbers<[1], [0], [0], [1], [0, 0, 1, 1], [], []>} : vector<16x128xbf16>, vector<128x128xbf16>, vector<16x128xf32> -> vector<16x128xf32>
    %c0_3 = arith.constant 0 : index
    %c0_4 = arith.constant 0 : index
    %3 = vector.load %arg3[%c0_3, %c0_4] : memref<1x128xf32, #tpu.memory_space<vmem>>, vector<1x128xf32>
    %4 = vector.broadcast %3 : vector<1x128xf32> to vector<16x128xf32>
    %5 = arith.addf %2, %4 : vector<16x128xf32>
    %c0_5 = arith.constant 0 : index
    %c0_6 = arith.constant 0 : index
    %6 = vector.load %arg4[%c0_5, %c0_6] : memref<16x128xf32, #tpu.memory_space<vmem>>, vector<16x128xf32>
    tpu.vector_store %arg4[%c0_5, %c0_6], %5 {strides = array<i32>} : memref<16x128xf32, #tpu.memory_space<vmem>>, vector<16x128xf32>,
    return
  }
  func.func @transform_0(%arg0: i32) -> (i32, i32) {
    %c0_i32 = arith.constant 0 : i32
    %c0_i32_0 = arith.constant 0 : i32
    return %arg0, %c0_i32 : i32, i32
  }
  func.func @transform_1(%arg0: i32) -> (i32, i32) {
    %c0_i32 = arith.constant 0 : i32
    %c0_i32_0 = arith.constant 0 : i32
    %c0_i32_1 = arith.constant 0 : i32
    return %c0_i32, %c0_i32_0 : i32, i32
  }
  func.func @transform_2(%arg0: i32) -> (i32, i32) {
    %c0_i32 = arith.constant 0 : i32
    %c0_i32_0 = arith.constant 0 : i32
    %c0_i32_1 = arith.constant 0 : i32
    return %c0_i32, %c0_i32_0 : i32, i32
  }
  func.func @transform_3(%arg0: i32) -> (i32, i32) {
    %c0_i32 = arith.constant 0 : i32
    %c0_i32_0 = arith.constant 0 : i32
    return %arg0, %c0_i32 : i32, i32
  }
}

</mosaic_0001>

<llo_original>
// kernel: tpu_custom_call.1
$region0: #{tpu_custom_call.1}
  #allocation0 [shape = 'u32[]', space=smem, size = 0x4, offset = 0x4, fixed_abs, tag = 'smem constant byte address 0x4 - core index']
  #allocation1 [shape = 'u32[72,128]{1,0:T(1,128)}', space=vmem, size = 0x9000, scoped, tag = 'internal scratch']
  %s0 = inlined_call_operand.hbm [shape: bf16[16,128], index: 0, kind: input, shape index: {}]
  %s1 = inlined_call_operand.hbm [shape: bf16[128,128], index: 1, kind: input, shape index: {}]
  %s2 = inlined_call_operand.vmem [shape: f32[1,128], index: 2, kind: input, shape index: {}]
  %s3 = inlined_call_operand.hbm [shape: f32[16,128], index: 3, kind: output, shape index: {}]
  %s4 = sld [smem:[#allocation0]]
  $region30: #{tpu_custom_call.1} parent=0
    _
  %s6 = ssub.s32 1, %s4
  %s7 = scalar_select 0, %s6, %s4
  $region1: #{tpu_custom_call.1} parent=0
    #allocation2 [shape = 'u8[4096]{0}', space=vmem, size = 0x1000, scoped, tag = 'input window, operand 0, single buffered']
    #allocation3 [shape = 's32[1]{0}', space=sflag, size = 0x4, scoped, tag = 'scoped memory for tpu_custom_call.1']
    #allocation4 [shape = 's32[1]{0}', space=sflag, size = 0x4, scoped, tag = 'scoped memory for tpu_custom_call.1']
    #allocation5 [shape = 'u8[32768]{0}', space=vmem, size = 0x8000, scoped, tag = 'input window, operand 1, single buffered']
    #allocation6 [shape = 's32[1]{0}', space=sflag, size = 0x4, scoped, tag = 'scoped memory for tpu_custom_call.1']
    #allocation7 [shape = 'u8[8192]{0}', space=vmem, size = 0x2000, scoped, tag = 'output window, operand 0, single buffered']
    %8 = vsyncpa [#allocation3], 0
    %9 = vsyncpa [#allocation6], 0
    %10 = vsyncpa [#allocation4], 0
    // Predicated region
    $region2: #{tpu_custom_call.1} parent=1 // pred_check
      _
    $region3: #{tpu_custom_call.1} parent=1 // pred_check_branch
      %12 = sbr.rel (0) target = $region5
    $region4: #{tpu_custom_call.1} parent=1 // pred_region
      %14 = vsyncadd [#allocation3], 0
      %s15 = sshll.u32 %s0, 4
      %s16 = int_to_ptr.hbm [resolvable:$true] %s15
      %s17 = sshll.u32 [#allocation2], 4
      %s18 = int_to_ptr.vmem [resolvable:$true] %s17
      %23 = dma.hbm_to_vmem [thread:$0]  %s16, 128, %s18, [#allocation3], 64, 64, 4
    $region5: #{tpu_custom_call.1} parent=1 // pred_fallthru
      _
    // Predicated region
    $region6: #{tpu_custom_call.1} parent=1 // pred_check
      _
    $region7: #{tpu_custom_call.1} parent=1 // pred_check_branch
      %25 = sbr.rel (0) target = $region9
    $region8: #{tpu_custom_call.1} parent=1 // pred_region
      %27 = vsyncadd [#allocation6], 0
      %s28 = sshll.u32 %s1, 4
      %s29 = int_to_ptr.hbm [resolvable:$true] %s28
      %s30 = sshll.u32 [#allocation5], 4
      %s31 = int_to_ptr.vmem [resolvable:$true] %s30
      %36 = dma.hbm_to_vmem [thread:$0]  %s29, 1024, %s31, [#allocation6], 64, 64, 4
    $region9: #{tpu_custom_call.1} parent=1 // pred_fallthru
      _
    // Predicated region
    $region10: #{tpu_custom_call.1} parent=1 // pred_check
      _
    $region11: #{tpu_custom_call.1} parent=1 // pred_check_branch
      %38 = sbr.rel (0) target = $region13
    $region12: #{tpu_custom_call.1} parent=1 // pred_region
      _
    $region13: #{tpu_custom_call.1} parent=1 // pred_fallthru
      _
    // Predicated region
    $region14: #{tpu_custom_call.1} parent=1 // pred_check
      _
    $region15: #{tpu_custom_call.1} parent=1 // pred_check_branch
      %40 = sbr.rel (0) target = $region17
    $region16: #{tpu_custom_call.1} parent=1 // pred_region
      %42 = dma.done [#allocation3], 128
    $region17: #{tpu_custom_call.1} parent=1 // pred_fallthru
      _
    // Predicated region
    $region18: #{tpu_custom_call.1} parent=1 // pred_check
      _
    $region19: #{tpu_custom_call.1} parent=1 // pred_check_branch
      %44 = sbr.rel (0) target = $region21
    $region20: #{tpu_custom_call.1} parent=1 // pred_region
      %46 = dma.done [#allocation6], 1024
    $region21: #{tpu_custom_call.1} parent=1 // pred_fallthru
      _
    %v47 = vld [vmem:[#allocation2] sm:$0xf]
    %v48 = vld [vmem:[#allocation2 + $0x4] sm:$0xf]
    %v49 = vld [vmem:[#allocation5] sm:$0xf]
    %v50 = vld [vmem:[#allocation5 + $0x4] sm:$0xf]
    %v51 = vld [vmem:[#allocation5 + $0x8] sm:$0xf]
    %v52 = vld [vmem:[#allocation5 + $0xc] sm:$0xf]
    %v53 = vld [vmem:[#allocation5 + $0x10] sm:$0xf]
    %v54 = vld [vmem:[#allocation5 + $0x14] sm:$0xf]
    %v55 = vld [vmem:[#allocation5 + $0x18] sm:$0xf]
    %v56 = vld [vmem:[#allocation5 + $0x1c] sm:$0xf]
    %v57 = vld [vmem:[#allocation5 + $0x20] sm:$0xf]
    %v58 = vld [vmem:[#allocation5 + $0x24] sm:$0xf]
    %v59 = vld [vmem:[#allocation5 + $0x28] sm:$0xf]
    %v60 = vld [vmem:[#allocation5 + $0x2c] sm:$0xf]
    %v61 = vld [vmem:[#allocation5 + $0x30] sm:$0xf]
    %v62 = vld [vmem:[#allocation5 + $0x34] sm:$0xf]
    %v63 = vld [vmem:[#allocation5 + $0x38] sm:$0xf]
    %v64 = vld [vmem:[#allocation5 + $0x3c] sm:$0xf]
    %v65 = vld [vmem:[%s2] sm:$0x1]
    %v67 = vperm.slane %v65, 0
    %v71 = vunpack.c.l.b16 %v47
    %v72 = vunpack.c.l.b16 %v48
    %v73 = vpack.c.b16 %v72, %v71
    %v91 = vunpack.c.l.b16 %v49
    %v92 = vunpack.c.l.b16 %v50
    %v93 = vunpack.c.l.b16 %v51
    %v94 = vunpack.c.l.b16 %v52
    %v95 = vunpack.c.l.b16 %v53
    %v96 = vunpack.c.l.b16 %v54
    %v97 = vunpack.c.l.b16 %v55
    %v98 = vunpack.c.l.b16 %v56
    %v99 = vunpack.c.l.b16 %v57
    %v100 = vunpack.c.l.b16 %v58
    %v101 = vunpack.c.l.b16 %v59
    %v102 = vunpack.c.l.b16 %v60
    %v103 = vunpack.c.l.b16 %v61
    %v104 = vunpack.c.l.b16 %v62
    %v105 = vunpack.c.l.b16 %v63
    %v106 = vunpack.c.l.b16 %v64
    %v107 = vpack.c.b16 %v92, %v91
    %v108 = vpack.c.b16 %v94, %v93
    %v109 = vpack.c.b16 %v96, %v95
    %v110 = vpack.c.b16 %v98, %v97
    %v111 = vpack.c.b16 %v100, %v99
    %v112 = vpack.c.b16 %v102, %v101
    %v113 = vpack.c.b16 %v104, %v103
    %v114 = vpack.c.b16 %v106, %v105
    %123 = vmatpush.bf16.msra.mxu0 %v114
    %124 = vmatpush.bf16.msra.mxu0 %v113
    %125 = vmatpush.bf16.msra.mxu0 %v112
    %126 = vmatpush.bf16.msra.mxu0 %v111
    %127 = vmatpush.bf16.msra.mxu0 %v110
    %128 = vmatpush.bf16.msra.mxu0 %v109
    %129 = vmatpush.bf16.msra.mxu0 %v108
    %130 = vmatpush.bf16.msra.mxu0 %v107
    %131 = vmatmul.bf16.gmra.mxu0 %v73
    %v132 = vpop.f32.mrf.mxu0
    %v133 = vadd.f32 %v67, %v132
    %v134 = vpop.f32.mrf.mxu0
    %v135 = vadd.f32 %v67, %v134
    %136 = vdwg.mxu0
    %137 = vst [vmem:[#allocation7] sm:$0xff] %v133
    %138 = vst [vmem:[#allocation7 + $0x8] sm:$0xff] %v135
    // Predicated region
    $region22: #{tpu_custom_call.1} parent=1 // pred_check
      _
    $region23: #{tpu_custom_call.1} parent=1 // pred_check_branch
      %140 = sbr.rel (0) target = $region25
    $region24: #{tpu_custom_call.1} parent=1 // pred_region
      %142 = vsyncadd [#allocation4], 0
      %s143 = sshll.u32 [#allocation7], 4
      %s144 = int_to_ptr.vmem [resolvable:$true] %s143
      %s145 = sshll.u32 %s3, 4
      %s146 = int_to_ptr.hbm [resolvable:$true] %s145
      %151 = dma.vmem_to_hbm [thread:$0]  %s144, 256, %s146, [#allocation4], 128, 128, 8
    $region25: #{tpu_custom_call.1} parent=1 // pred_fallthru
      _
    // Predicated region
    $region26: #{tpu_custom_call.1} parent=1 // pred_check
      _
    $region27: #{tpu_custom_call.1} parent=1 // pred_check_branch
      %153 = sbr.rel (0) target = $region29
    $region28: #{tpu_custom_call.1} parent=1 // pred_region
      %155 = dma.done [#allocation4], 256
    $region29: #{tpu_custom_call.1} parent=1 // pred_fallthru
      _
    %156 = vsyncpa [#allocation3], 1
    %157 = vsyncpa [#allocation6], 1
    %158 = vsyncpa [#allocation4], 1

</llo_original>
